<compile_context>
chip_gen: v7x
topology: tpu7x:2x2x1
jax: 0.10.0
libtpu: 0.0.40
codegen_flags: <defaults>
</compile_context>

<pallas_src>
import numpy as np
import jax
import jax.numpy as jnp
from jax.experimental import pallas as pl
from jax.experimental.pallas import tpu as pltpu

EPS = 1e-5
_VMEM_LIMIT = 32 * 1024 * 1024            # per-step tiles below use ~<=12 MiB
_HIGH = jax.lax.Precision.HIGHEST


def _row_tile(n_points):
    """Largest row tile (multiple of 8) dividing the per-cloud point count."""
    assert n_points % 8 == 0, "points-per-cloud must be a multiple of 8"
    for t in (1024, 512, 256, 128, 64, 32, 16, 8):
        if n_points % t == 0:
            return t
    return 8   # unreachable given the assert


# ----------------------------- Pallas kernels -------------------------------

def _make_passA_kernel(has_affine, has_transform, write_y):
    """Pass A of a 1x1 conv layer for one (batch, row-tile) grid point:
       a = relu(x*sc + sh)      (optional: fused BN+ReLU of the previous layer)
       a = a @ T[batch]         (optional: per-batch feature transform / bmm)
       y = a @ W                (pre-BN output, optionally written to HBM)
       accumulate per-batch per-channel sum(y), sum(y*y)."""
    def kernel(*refs):
        i = 0
        x = refs[i][...]; i += 1
        if has_affine:
            sc = refs[i][...]; sh = refs[i + 1][...]; i += 2
            x = jnp.maximum(x * sc + sh, 0.0)
        if has_transform:
            t = refs[i][...]; i += 1
            x = jnp.dot(x, t, preferred_element_type=jnp.float32)
        w = refs[i][...]; i += 1
        y = jnp.dot(x, w, preferred_element_type=jnp.float32)
        if write_y:
            refs[i][...] = y; i += 1
        s_ref = refs[i]
        q_ref = refs[i + 1]

        @pl.when(pl.program_id(1) == 0)
        def _():
            s_ref[...] = jnp.zeros(s_ref.shape, s_ref.dtype)
            q_ref[...] = jnp.zeros(q_ref.shape, q_ref.dtype)

        s_ref[...] += jnp.sum(y, axis=0, keepdims=True)
        q_ref[...] += jnp.sum(y * y, axis=0, keepdims=True)
    return kernel


def _passB_max_kernel(x_ref, sci_ref, shi_ref, w_ref, sco_ref, sho_ref, o_ref):
    """Pass B of a trunk-final conv: re-read the (narrow) pre-BN input,
    recompute y (never stored), apply the global BN affine + ReLU and reduce
    with a running max over the points of each batch."""
    a = jnp.maximum(x_ref[...] * sci_ref[...] + shi_ref[...], 0.0)
    y = jnp.dot(a, w_ref[...], preferred_element_type=jnp.float32)
    z = jnp.maximum(y * sco_ref[...] + sho_ref[...], 0.0)

    @pl.when(pl.program_id(1) == 0)
    def _():
        o_ref[...] = jnp.full(o_ref.shape, -jnp.inf, o_ref.dtype)

    o_ref[...] = jnp.maximum(o_ref[...], jnp.max(z, axis=0, keepdims=True))


def _fc_head_kernel(g_ref, w0_ref, g0_ref, b0_ref, w1_ref, g1_ref, b1_ref,
                    w2_ref, bias2_ref, eye_ref, o_ref):
    """Fused T-net FC head: fc0+BN+ReLU -> fc1+BN+ReLU -> fc2 + flat identity.
    The whole batch (B rows) and all weights live in VMEM; BN uses batch stats."""
    def bn_relu(y, gamma, beta):
        m = jnp.mean(y, axis=0, keepdims=True)
        v = jnp.mean((y - m) * (y - m), axis=0, keepdims=True)   # biased, PyTorch fwd
        return jnp.maximum((y - m) * jax.lax.rsqrt(v + EPS) * gamma + beta, 0.0)

    h = jnp.dot(g_ref[...], w0_ref[...], preferred_element_type=jnp.float32)
    h = bn_relu(h, g0_ref[...], b0_ref[...])
    h = jnp.dot(h, w1_ref[...], preferred_element_type=jnp.float32)
    h = bn_relu(h, g1_ref[...], b1_ref[...])
    o_ref[...] = (jnp.dot(h, w2_ref[...], preferred_element_type=jnp.float32)
                  + bias2_ref[...] + eye_ref[...])


# ----------------------------- Pallas wrappers ------------------------------

def conv_pass_a(x, w, B, N, sc=None, sh=None, T=None, write_y=True):
    """x: (B*N, Cin) pre-BN (or raw) rows; w: (Cin, Cout); sc/sh: (1, Cin)
    previous-layer BN affine; T: (B, Cin, Cin) per-batch transform.
    Returns (y, sum, sumsq) or (sum, sumsq), stats shaped (B, 1, Cout)."""
    R, Cin = x.shape
    Cout = w.shape[-1]
    TR = _row_tile(N)
    ntb = N // TR
    has_aff = sc is not None
    has_tr = T is not None

    kernel = _make_passA_kernel(has_aff, has_tr, write_y)

    in_specs = [pl.BlockSpec((TR, Cin), lambda bi, t: (bi * ntb + t, 0))]
    args = [x]
    if has_aff:
        in_specs += [pl.BlockSpec((1, Cin), lambda bi, t: (0, 0)),
                     pl.BlockSpec((1, Cin), lambda bi, t: (0, 0))]
        args += [sc, sh]
    if has_tr:
        in_specs += [pl.BlockSpec((None, Cin, Cin), lambda bi, t: (bi, 0, 0))]
        args += [T]
    in_specs += [pl.BlockSpec((Cin, Cout), lambda bi, t: (0, 0))]
    args += [w]

    out_shapes, out_specs = [], []
    if write_y:
        out_shapes.append(jax.ShapeDtypeStruct((R, Cout), jnp.float32))
        out_specs.append(pl.BlockSpec((TR, Cout), lambda bi, t: (bi * ntb + t, 0)))
    stat_shape = jax.ShapeDtypeStruct((B, 1, Cout), jnp.float32)
    stat_spec = pl.BlockSpec((None, 1, Cout), lambda bi, t: (bi, 0, 0))
    out_shapes += [stat_shape, stat_shape]
    out_specs += [stat_spec, stat_spec]

    return pl.pallas_call(
        kernel,
        out_shape=tuple(out_shapes),
        grid=(B, ntb),
        in_specs=in_specs,
        out_specs=tuple(out_specs),
        compiler_params=pltpu.CompilerParams(
            dimension_semantics=("parallel", "arbitrary"),
            vmem_limit_bytes=_VMEM_LIMIT),
    )(*args)


def conv_pass_b_max(x, w, sci, shi, sco, sho, B, N):
    """Recompute the trunk-final conv from its pre-BN input and reduce with a
    per-batch max over points.  Returns (B, Cout)."""
    R, Cin = x.shape
    Cout = w.shape[-1]
    TR = _row_tile(N)
    ntb = N // TR
    out3 = pl.pallas_call(
        _passB_max_kernel,
        out_shape=jax.ShapeDtypeStruct((B, 1, Cout), jnp.float32),
        grid=(B, ntb),
        in_specs=[pl.BlockSpec((TR, Cin), lambda bi, t: (bi * ntb + t, 0)),
                  pl.BlockSpec((1, Cin), lambda bi, t: (0, 0)),
                  pl.BlockSpec((1, Cin), lambda bi, t: (0, 0)),
                  pl.BlockSpec((Cin, Cout), lambda bi, t: (0, 0)),
                  pl.BlockSpec((1, Cout), lambda bi, t: (0, 0)),
                  pl.BlockSpec((1, Cout), lambda bi, t: (0, 0))],
        out_specs=pl.BlockSpec((None, 1, Cout), lambda bi, t: (bi, 0, 0)),
        compiler_params=pltpu.CompilerParams(
            dimension_semantics=("parallel", "arbitrary"),
            vmem_limit_bytes=_VMEM_LIMIT),
    )(x, sci, shi, w, sco, sho)
    return out3.reshape(B, Cout)


def fc_head(g, p, n):
    """Fused fc0/fc1/fc2 head of a T-net; g: (B, 1024) pooled features."""
    B = g.shape[0]
    nn = n * n
    eye = jnp.eye(n, dtype=jnp.float32).reshape(1, nn)
    args = (g, p['fw0'], p['fg0'], p['fb0'], p['fw1'], p['fg1'], p['fb1'],
            p['fw2'], p['fbias2'], eye)

    def full(shape):
        return pl.BlockSpec(shape, lambda i: (0,) * len(shape))

    return pl.pallas_call(
        _fc_head_kernel,
        out_shape=jax.ShapeDtypeStruct((B, nn), jnp.float32),
        grid=(1,),
        in_specs=[full(a.shape) for a in args],
        out_specs=full((B, nn)),
        compiler_params=pltpu.CompilerParams(vmem_limit_bytes=_VMEM_LIMIT),
    )(*args)


def _bn_scale_shift(psum, psq, gamma, beta, rows):
    """Tiny (B,1,C)->(1,C) glue math turning global batch stats into the BN
    affine y*scale + shift (training-mode, biased variance)."""
    colsum = jnp.sum(psum, axis=0)                     # (1, C)
    colsq = jnp.sum(psq, axis=0)
    mean = colsum / rows
    var = jnp.maximum(colsq / rows - mean * mean, 0.0)
    inv = jax.lax.rsqrt(var + EPS)
    scale = gamma * inv
    shift = beta - mean * scale
    return scale, shift


# ------------------------- parameter initialization -------------------------

def _uniform(key, shape, bound):
    return jax.random.uniform(key, shape, jnp.float32, -bound, bound)


def init_conv(key, cin, cout):
    # Conv1d / Linear weight (stored (Cin, Cout)).  The bias is omitted for
    # every layer followed by BatchNorm: batch-stat BN cancels it exactly.
    return _uniform(key, (cin, cout), 1.0 / float(np.sqrt(cin)))


def init_bn(cout):
    return (jnp.ones((1, cout), jnp.float32), jnp.zeros((1, cout), jnp.float32))


def init_tnet(key, n):
    ks = jax.random.split(key, 7)
    g0, b0 = init_bn(64)
    g1, b1 = init_bn(128)
    g2, b2 = init_bn(1024)
    fg0, fb0 = init_bn(512)
    fg1, fb1 = init_bn(256)
    return {
        'w0': init_conv(ks[0], n, 64), 'g0': g0, 'b0': b0,
        'w1': init_conv(ks[1], 64, 128), 'g1': g1, 'b1': b1,
        'w2': init_conv(ks[2], 128, 1024), 'g2': g2, 'b2': b2,
        'fw0': init_conv(ks[3], 1024, 512), 'fg0': fg0, 'fb0': fb0,
        'fw1': init_conv(ks[4], 512, 256), 'fg1': fg1, 'fb1': fb1,
        'fw2': init_conv(ks[5], 256, n * n),
        'fbias2': _uniform(ks[6], (1, n * n), 1.0 / float(np.sqrt(256))),
    }


def init_transform(key):
    ks = jax.random.split(key, 5)
    g0, b0 = init_bn(64)
    g1, b1 = init_bn(128)
    g2, b2 = init_bn(1024)
    return {
        'tnet3': init_tnet(ks[0], 3),
        'tnet64': init_tnet(ks[1], 64),
        'c0w': init_conv(ks[2], 3, 64), 'c0g': g0, 'c0b': b0,
        'c1w': init_conv(ks[3], 64, 128), 'c1g': g1, 'c1b': b1,
        'c2w': init_conv(ks[4], 128, 1024), 'c2g': g2, 'c2b': b2,
    }


# ------------------------------ forward passes ------------------------------

def tnet_forward(xin, sc_in, sh_in, p, n, B, N):
    """xin: (B*N, Cin) rows.  If (sc_in, sh_in) are given, xin is the PRE-BN
    activation of the producing layer and its BN+ReLU is fused into this
    T-net's first conv."""
    rows = B * N
    y0, s0, q0 = conv_pass_a(xin, p['w0'], B, N, sc=sc_in, sh=sh_in)
    sc0, sh0 = _bn_scale_shift(s0, q0, p['g0'], p['b0'], rows)

    y1, s1, q1 = conv_pass_a(y0, p['w1'], B, N, sc=sc0, sh=sh0)
    sc1, sh1 = _bn_scale_shift(s1, q1, p['g1'], p['b1'], rows)

    # conv2: stats-only pass A, then recompute pass B fused with the point max
    # (the (B*N, 1024) pre-BN slab is never written to HBM).
    s2, q2 = conv_pass_a(y1, p['w2'], B, N, sc=sc1, sh=sh1, write_y=False)
    sc2, sh2 = _bn_scale_shift(s2, q2, p['g2'], p['b2'], rows)
    g = conv_pass_b_max(y1, p['w2'], sc1, sh1, sc2, sh2, B, N)    # (B, 1024)

    out = fc_head(g, p, n)                                        # (B, n*n)
    return out.reshape(B, n, n)


def transform_forward(x_ncw, p):
    """x_ncw: (B, 3, N), the PyTorch NCW input layout."""
    B, _, N = x_ncw.shape
    rows = B * N
    x_bn3 = jnp.transpose(x_ncw, (0, 2, 1))                       # (B, N, 3)
    x = x_bn3.reshape(rows, 3)

    x1 = tnet_forward(x, None, None, p['tnet3'], 3, B, N)         # (B, 3, 3)

    # bmm(input^T, x1): tiny K=3 per-batch transform done in plain JAX so the
    # rounding order matches the reference exactly (the (B*N,3) slab is tiny).
    xt = jnp.einsum('bnk,bkm->bnm', x_bn3, x1, precision=_HIGH).reshape(rows, 3)
    y0, s0, q0 = conv_pass_a(xt, p['c0w'], B, N)                  # pre-BN (B*N, 64)
    sc0, sh0 = _bn_scale_shift(s0, q0, p['c0g'], p['c0b'], rows)

    # tnet64 consumes the same pre-BN y0 (BN0+ReLU fused into its first conv).
    x2 = tnet_forward(y0, sc0, sh0, p['tnet64'], 64, B, N)        # (B, 64, 64)

    # conv1: fuse BN0+ReLU on the input, the per-batch bmm with x2, and the
    # 64->128 matmul; the normalized / transformed activation never hits HBM.
    y1, s1, q1 = conv_pass_a(y0, p['c1w'], B, N, sc=sc0, sh=sh0, T=x2)
    sc1, sh1 = _bn_scale_shift(s1, q1, p['c1g'], p['c1b'], rows)

    # conv2: stats-only pass A, pass B recompute + BN2 + ReLU + max over points
    s2, q2 = conv_pass_a(y1, p['c2w'], B, N, sc=sc1, sh=sh1, write_y=False)
    sc2, sh2 = _bn_scale_shift(s2, q2, p['c2g'], p['c2b'], rows)
    out = conv_pass_b_max(y1, p['c2w'], sc1, sh1, sc2, sh2, B, N)  # (B, 1024)
    return out, x1, x2


# ------------------------------ pure-JAX reference ---------------------------

def _ref_bn_relu(y, gamma, beta):
    m = y.mean(0, keepdims=True)
    v = ((y - m) ** 2).mean(0, keepdims=True)
    return jnp.maximum((y - m) * jax.lax.rsqrt(v + EPS) * gamma + beta, 0.0)


def _ref_cbr(x, w, gamma, beta):
    return _ref_bn_relu(jnp.dot(x, w, precision=_HIGH), gamma, beta)


def _ref_tnet(x_flat, p, n, B, N):
    h = _ref_cbr(x_flat, p['w0'], p['g0'], p['b0'])
    h = _ref_cbr(h, p['w1'], p['g1'], p['b1'])
    h = _ref_cbr(h, p['w2'], p['g2'], p['b2'])
    g = jnp.max(h.reshape(B, N, 1024), axis=1)
    g = _ref_bn_relu(jnp.dot(g, p['fw0'], precision=_HIGH), p['fg0'], p['fb0'])
    g = _ref_bn_relu(jnp.dot(g, p['fw1'], precision=_HIGH), p['fg1'], p['fb1'])
    out = (jnp.dot(g, p['fw2'], precision=_HIGH) + p['fbias2']
           + jnp.eye(n, dtype=jnp.float32).reshape(1, n * n))
    return out.reshape(B, n, n)


def _ref_transform(x_ncw, p):
    B, _, N = x_ncw.shape
    x = jnp.transpose(x_ncw, (0, 2, 1))                           # (B, N, 3)
    x1 = _ref_tnet(x.reshape(B * N, 3), p['tnet3'], 3, B, N)
    xt = jnp.einsum('bnk,bkm->bnm', x, x1, precision=_HIGH)
    a0 = _ref_cbr(xt.reshape(B * N, 3), p['c0w'], p['c0g'], p['c0b'])
    x2 = _ref_tnet(a0, p['tnet64'], 64, B, N)
    at = jnp.einsum('bnk,bkm->bnm', a0.reshape(B, N, 64), x2, precision=_HIGH)
    a1 = _ref_cbr(at.reshape(B * N, 64), p['c1w'], p['c1g'], p['c1b'])
    a2 = _ref_cbr(a1, p['c2w'], p['c2g'], p['c2b'])
    out = jnp.max(a2.reshape(B, N, 1024), axis=1)
    return out, x1, x2


# ----------------------------------- main ------------------------------------

if __name__ == "__main__":
    key = jax.random.PRNGKey(0)
    kx, kp = jax.random.split(key)
    B, N = 2, 64                                   # small version of (32, 3, 1024)
    x = jax.random.uniform(kx, (B, 3, N), jnp.float32)   # like torch.rand(B, 3, N)
    params = init_transform(kp)

    out, x1, x2 = transform_forward(x, params)
    (out, x1, x2) = jax.block_until_ready((out, x1, x2))

    assert out.shape == (B, 1024)
    assert x1.shape == (B, 3, 3)
    assert x2.shape == (B, 64, 64)
    assert bool(jnp.all(jnp.isfinite(out)))
    assert bool(jnp.all(jnp.isfinite(x1)))
    assert bool(jnp.all(jnp.isfinite(x2)))

    r_out, r_x1, r_x2 = _ref_transform(x, params)
    # Training-mode BN chains amplify f32-vs-MXU rounding; 2e-2 gives headroom
    # over the worst-case ~1.5e-2 seen before the bmm-fold fix (now removed).
    np.testing.assert_allclose(np.asarray(x1), np.asarray(r_x1), atol=2e-2, rtol=2e-2)
    np.testing.assert_allclose(np.asarray(x2), np.asarray(r_x2), atol=2e-2, rtol=2e-2)
    np.testing.assert_allclose(np.asarray(out), np.asarray(r_out), atol=2e-2, rtol=2e-2)

    print("KERNEL_OK")
</pallas_src>

<mosaic_0001>
module attributes {stable_mosaic.version = 11 : i64} {
  func.func @kernel(%arg0: i32, %arg1: i32, %arg2: memref<64x3xf32, #tpu.memory_space<vmem>>, %arg3: memref<3x64xf32, #tpu.memory_space<vmem>>, %arg4: memref<64x64xf32, #tpu.memory_space<vmem>>, %arg5: memref<1x1x64xf32, #tpu.memory_space<vmem>>, %arg6: memref<1x1x64xf32, #tpu.memory_space<vmem>>) attributes {dimension_semantics = [#tpu.dimension_semantics<parallel>, #tpu.dimension_semantics<arbitrary>], iteration_bounds = array<i64: 2, 1>, scalar_prefetch = 0 : i64, scratch_operands = 0 : i64, tpu.core_type = #tpu.core_type<tc>, window_params = [{transform_indices = @transform_0, window_bounds = array<i64: 64, 3>}, {pipeline_mode = #tpu.pipeline_mode<synchronous>, transform_indices = @transform_1, window_bounds = array<i64: 3, 64>}, {transform_indices = @transform_2, window_bounds = array<i64: 64, 64>}, {transform_indices = @transform_3, window_bounds = array<i64: 1, 1, 64>}, {transform_indices = @transform_4, window_bounds = array<i64: 1, 1, 64>}]} {
    %c0 = arith.constant 0 : index
    %c0_0 = arith.constant 0 : index
    %0 = vector.load %arg2[%c0, %c0_0] : memref<64x3xf32, #tpu.memory_space<vmem>>, vector<64x3xf32>
    %c0_1 = arith.constant 0 : index
    %c0_2 = arith.constant 0 : index
    %1 = vector.load %arg3[%c0_1, %c0_2] : memref<3x64xf32, #tpu.memory_space<vmem>>, vector<3x64xf32>
    %cst = arith.constant dense<0.000000e+00> : vector<64x64xf32>
    %2 = tpu.matmul %0, %1, %cst {dimension_numbers = #tpu.dot_dimension_numbers<[1], [0], [0], [1], [0, 0, 1, 1], [], []>} : vector<64x3xf32>, vector<3x64xf32>, vector<64x64xf32> -> vector<64x64xf32>
    %c0_3 = arith.constant 0 : index
    %c0_4 = arith.constant 0 : index
    %3 = vector.load %arg4[%c0_3, %c0_4] : memref<64x64xf32, #tpu.memory_space<vmem>>, vector<64x64xf32>
    tpu.vector_store %arg4[%c0_3, %c0_4], %2 {strides = array<i32>} : memref<64x64xf32, #tpu.memory_space<vmem>>, vector<64x64xf32>,
    %c0_i32 = arith.constant 0 : i32
    %4 = arith.cmpi eq, %arg1, %c0_i32 : i32
    %5 = arith.extui %4 : i1 to i32
    %c0_i32_5 = arith.constant 0 : i32
    %6 = arith.cmpi ne, %5, %c0_i32_5 : i32
    scf.if %6 {
      %cst_20 = arith.constant 0.000000e+00 : f32
      %24 = vector.broadcast %cst_20 : f32 to vector<1x64xf32>
      %c0_21 = arith.constant 0 : index
      %c0_22 = arith.constant 0 : index
      %c0_23 = arith.constant 0 : index
      %25 = vector.load %arg5[%c0_21, %c0_22, %c0_23] : memref<1x1x64xf32, #tpu.memory_space<vmem>>, vector<1x1x64xf32>
      %26 = vector.shape_cast %25 : vector<1x1x64xf32> to vector<1x64xf32>
      %27 = vector.shape_cast %24 : vector<1x64xf32> to vector<1x1x64xf32>
      tpu.vector_store %arg5[%c0_21, %c0_22, %c0_23], %27 {strides = array<i32>} : memref<1x1x64xf32, #tpu.memory_space<vmem>>, vector<1x1x64xf32>,
      %cst_24 = arith.constant 0.000000e+00 : f32
      %28 = vector.broadcast %cst_24 : f32 to vector<1x64xf32>
      %c0_25 = arith.constant 0 : index
      %c0_26 = arith.constant 0 : index
      %c0_27 = arith.constant 0 : index
      %29 = vector.load %arg6[%c0_25, %c0_26, %c0_27] : memref<1x1x64xf32, #tpu.memory_space<vmem>>, vector<1x1x64xf32>
      %30 = vector.shape_cast %29 : vector<1x1x64xf32> to vector<1x64xf32>
      %31 = vector.shape_cast %28 : vector<1x64xf32> to vector<1x1x64xf32>
      tpu.vector_store %arg6[%c0_25, %c0_26, %c0_27], %31 {strides = array<i32>} : memref<1x1x64xf32, #tpu.memory_space<vmem>>, vector<1x1x64xf32>,
    } else {
    }
    %c0_6 = arith.constant 0 : index
    %c0_7 = arith.constant 0 : index
    %c0_8 = arith.constant 0 : index
    %7 = vector.load %arg5[%c0_6, %c0_7, %c0_8] : memref<1x1x64xf32, #tpu.memory_space<vmem>>, vector<1x1x64xf32>
    %8 = vector.shape_cast %7 : vector<1x1x64xf32> to vector<1x64xf32>
    %cst_9 = arith.constant dense<0.000000e+00> : vector<64xf32>
    %9 = vector.multi_reduction <add>, %2, %cst_9 [0] : vector<64x64xf32> to vector<64xf32>
    %10 = vector.shape_cast %9 : vector<64xf32> to vector<1x64xf32>
    %11 = arith.addf %8, %10 : vector<1x64xf32>
    %c0_10 = arith.constant 0 : index
    %c0_11 = arith.constant 0 : index
    %c0_12 = arith.constant 0 : index
    %12 = vector.load %arg5[%c0_10, %c0_11, %c0_12] : memref<1x1x64xf32, #tpu.memory_space<vmem>>, vector<1x1x64xf32>
    %13 = vector.shape_cast %12 : vector<1x1x64xf32> to vector<1x64xf32>
    %14 = vector.shape_cast %11 : vector<1x64xf32> to vector<1x1x64xf32>
    tpu.vector_store %arg5[%c0_10, %c0_11, %c0_12], %14 {strides = array<i32>} : memref<1x1x64xf32, #tpu.memory_space<vmem>>, vector<1x1x64xf32>,
    %c0_13 = arith.constant 0 : index
    %c0_14 = arith.constant 0 : index
    %c0_15 = arith.constant 0 : index
    %15 = vector.load %arg6[%c0_13, %c0_14, %c0_15] : memref<1x1x64xf32, #tpu.memory_space<vmem>>, vector<1x1x64xf32>
    %16 = vector.shape_cast %15 : vector<1x1x64xf32> to vector<1x64xf32>
    %17 = arith.mulf %2, %2 : vector<64x64xf32>
    %cst_16 = arith.constant dense<0.000000e+00> : vector<64xf32>
    %18 = vector.multi_reduction <add>, %17, %cst_16 [0] : vector<64x64xf32> to vector<64xf32>
    %19 = vector.shape_cast %18 : vector<64xf32> to vector<1x64xf32>
    %20 = arith.addf %16, %19 : vector<1x64xf32>
    %c0_17 = arith.constant 0 : index
    %c0_18 = arith.constant 0 : index
    %c0_19 = arith.constant 0 : index
    %21 = vector.load %arg6[%c0_17, %c0_18, %c0_19] : memref<1x1x64xf32, #tpu.memory_space<vmem>>, vector<1x1x64xf32>
    %22 = vector.shape_cast %21 : vector<1x1x64xf32> to vector<1x64xf32>
    %23 = vector.shape_cast %20 : vector<1x64xf32> to vector<1x1x64xf32>
    tpu.vector_store %arg6[%c0_17, %c0_18, %c0_19], %23 {strides = array<i32>} : memref<1x1x64xf32, #tpu.memory_space<vmem>>, vector<1x1x64xf32>,
    return
  }
  func.func @transform_0(%arg0: i32, %arg1: i32) -> (i32, i32) {
    %c1_i32 = arith.constant 1 : i32
    %0 = arith.muli %arg0, %c1_i32 : i32
    %1 = arith.addi %0, %arg1 : i32
    %c0_i32 = arith.constant 0 : i32
    %c0_i32_0 = arith.constant 0 : i32
    return %1, %c0_i32 : i32, i32
  }
  func.func @transform_1(%arg0: i32, %arg1: i32) -> (i32, i32) {
    %c0_i32 = arith.constant 0 : i32
    %c0_i32_0 = arith.constant 0 : i32
    %c0_i32_1 = arith.constant 0 : i32
    return %c0_i32, %c0_i32_0 : i32, i32
  }
  func.func @transform_2(%arg0: i32, %arg1: i32) -> (i32, i32) {
    %c1_i32 = arith.constant 1 : i32
    %0 = arith.muli %arg0, %c1_i32 : i32
    %1 = arith.addi %0, %arg1 : i32
    %c0_i32 = arith.constant 0 : i32
    %c0_i32_0 = arith.constant 0 : i32
    return %1, %c0_i32 : i32, i32
  }
  func.func @transform_3(%arg0: i32, %arg1: i32) -> (i32, i32, i32) {
    %c0_i32 = arith.constant 0 : i32
    %c0_i32_0 = arith.constant 0 : i32
    %c0_i32_1 = arith.constant 0 : i32
    return %arg0, %c0_i32, %c0_i32_0 : i32, i32, i32
  }
  func.func @transform_4(%arg0: i32, %arg1: i32) -> (i32, i32, i32) {
    %c0_i32 = arith.constant 0 : i32
    %c0_i32_0 = arith.constant 0 : i32
    %c0_i32_1 = arith.constant 0 : i32
    return %arg0, %c0_i32, %c0_i32_0 : i32, i32, i32
  }
}

</mosaic_0001>

<llo_original>
// kernel: tpu_custom_call.1
$region0: #{tpu_custom_call.1}
  #allocation0 [shape = 'u32[]', space=smem, size = 0x4, offset = 0x4, fixed_abs, tag = 'smem constant byte address 0x4 - core index']
  #allocation1 [shape = 'u32[144,128]{1,0:T(1,128)}', space=vmem, size = 0x12000, scoped, tag = 'internal scratch']
  %s0 = inlined_call_operand.vmem [shape: f32[128,3], index: 0, kind: input, shape index: {}]
  %s1 = inlined_call_operand.vmem [shape: f32[3,64], index: 1, kind: input, shape index: {}]
  %s2 = inlined_call_operand.vmem [shape: f32[128,64], index: 2, kind: output, shape index: {0}]
  %s3 = inlined_call_operand.hbm [shape: f32[2,1,64], index: 3, kind: output, shape index: {1}]
  %s4 = inlined_call_operand.hbm [shape: f32[2,1,64], index: 4, kind: output, shape index: {2}]
  %5 = xla_tuple %s2, %s3, %s4
  %s6 = sld [smem:[#allocation0]]
  $region61: #{tpu_custom_call.1} parent=0
    _
  %s8 = ssub.s32 1, %s6
  %s9 = scalar_select 0, %s8, %s6
  $region1: #{tpu_custom_call.1} parent=0
    #allocation2 [shape = 'u8[1024]{0}', space=vmem, size = 0x400, scoped, tag = 'output window, operand 1']
    #allocation3 [shape = 's32[2]{0}', space=sflag, size = 0x8, scoped, tag = 'scoped memory for tpu_custom_call.1']
    #allocation4 [shape = 'u8[1024]{0}', space=vmem, size = 0x400, scoped, tag = 'output window, operand 2']
    #allocation5 [shape = 's32[2]{0}', space=sflag, size = 0x8, scoped, tag = 'scoped memory for tpu_custom_call.1']
    %10 = vsyncpa [#allocation3], 0
    %s11 = scalar_lea.sflag [#allocation3], 1
    %12 = vsyncpa %s11, 0
    %13 = vsyncpa [#allocation5], 0
    %s14 = scalar_lea.sflag [#allocation5], 1
    %15 = vsyncpa %s14, 0
    loop: start=0, step=1, limit=4
    $region2: #{tpu_custom_call.1} parent=1 // loop_pre_header
      _
    $region3: #{tpu_custom_call.1} parent=1 // loop_header
      %s17 = sphi 0, %s21
      %p18 = scmp.ge.s32.totalorder %s17, 4
      %s24 = sphi 0, %s36
      %s25 = sphi 0, %s32
      %s26 = sphi 0, %s24
      %s27 = sphi 0, %s25
      %s28 = sphi 0, %s26
      %s29 = sphi 0, %s27
      %s41 = sphi 0, %s43
      %s44 = sphi 0, %s41
      %s45 = sphi 0, %s44
      %s61 = sphi 0, %s45
      %s65 = sphi 0, %s65
      %s67 = sphi 0, %s65
      %s68 = sphi 0, %s67
      %s82 = sphi 0, %s68
      %s90 = sphi 0, %s92
      %s93 = sphi 0, %s90
      %s94 = sphi 0, %s93
      %s110 = sphi 0, %s94
      %s116 = sphi 0, %s118
      %s119 = sphi 0, %s116
      %s120 = sphi 0, %s119
      %s136 = sphi 0, %s120
      %s142 = sphi 0, %s144
      %s145 = sphi 0, %s142
      %s146 = sphi 0, %s145
      %s162 = sphi 0, %s146
    $region4: #{tpu_custom_call.1} parent=1 // loop_header_branch
      %20 = sbr.rel (%p18) target = $region8
    $region5: #{tpu_custom_call.1} parent=1 // loop_body
      %s22 = ssub.s32 %s17, 1
      %s23 = ssub.s32 %s17, 2
      %s30 = sadd.s32 1, %s25
      %p31 = scmp.ge.s32.totalorder %s30, 1
      %s32 = scalar_select %p31, 0, %s30
      %s33 = sadd.s32 1, %s24
      %s34 = scalar_select %p31, %s33, %s24
      %p35 = scmp.ge.s32.totalorder %s34, 2
      %s36 = scalar_select %p35, 0, %s34
      %s37 = sadd.s32 %s24, %s25
      %s38 = sadd.s32 %s36, %s32
      %s39 = ssub.s32 %s37, %s38
      %p40 = scmp.eq.s32.totalorder %s39, 0
      %s42 = sadd.s32 %s41, 1
      %s43 = scalar_select %p40, %s41, %s42
      %p46 = pneg %p40
      %p47 = scmp.eq.s32.totalorder %s17, 1
      %p48 = por %p46, %p47
      %p49 = scmp.ne.s32.totalorder %s41, %s44
      %p50 = scmp.eq.s32.totalorder %s17, 0
      %p51 = por %p49, %p50
      %p52 = scmp.ne.s32.totalorder %s41, %s44
      %p53 = scmp.eq.s32.totalorder %s22, 1
      %p54 = por %p52, %p53
      %p55 = scmp.ne.s32.totalorder %s44, %s45
      %p56 = scmp.eq.s32.totalorder %s22, 0
      %p57 = por %p55, %p56
      %p58 = scmp.ne.s32.totalorder %s44, %s45
      %p59 = scmp.eq.s32.totalorder %s23, 1
      %p60 = por %p58, %p59
      %p62 = scmp.ne.s32.totalorder %s45, %s61
      %p63 = scmp.eq.s32.totalorder %s23, 0
      %p64 = por %p62, %p63
      %s66 = sadd.s32 %s65, 1
      %p69 = scmp.eq.s32.totalorder %s17, 1
      %p70 = scmp.ne.s32.totalorder %s65, %s67
      %p71 = scmp.eq.s32.totalorder %s17, 0
      %p72 = por %p70, %p71
      %p73 = scmp.ne.s32.totalorder %s65, %s67
      %p74 = scmp.eq.s32.totalorder %s22, 1
      %p75 = por %p73, %p74
      %p76 = scmp.ne.s32.totalorder %s67, %s68
      %p77 = scmp.eq.s32.totalorder %s22, 0
      %p78 = por %p76, %p77
      %p79 = scmp.ne.s32.totalorder %s67, %s68
      %p80 = scmp.eq.s32.totalorder %s23, 1
      %p81 = por %p79, %p80
      %p83 = scmp.ne.s32.totalorder %s68, %s82
      %p84 = scmp.eq.s32.totalorder %s23, 0
      %p85 = por %p83, %p84
      %s86 = sadd.s32 %s24, %s25
      %s87 = sadd.s32 %s36, %s32
      %s88 = ssub.s32 %s86, %s87
      %p89 = scmp.eq.s32.totalorder %s88, 0
      %s91 = sadd.s32 %s90, 1
      %s92 = scalar_select %p89, %s90, %s91
      %p95 = pneg %p89
      %p96 = scmp.eq.s32.totalorder %s17, 1
      %p97 = por %p95, %p96
      %p98 = scmp.ne.s32.totalorder %s90, %s93
      %p99 = scmp.eq.s32.totalorder %s17, 0
      %p100 = por %p98, %p99
      %p101 = scmp.ne.s32.totalorder %s90, %s93
      %p102 = scmp.eq.s32.totalorder %s22, 1
      %p103 = por %p101, %p102
      %p104 = scmp.ne.s32.totalorder %s93, %s94
      %p105 = scmp.eq.s32.totalorder %s22, 0
      %p106 = por %p104, %p105
      %p107 = scmp.ne.s32.totalorder %s93, %s94
      %p108 = scmp.eq.s32.totalorder %s23, 1
      %p109 = por %p107, %p108
      %p111 = scmp.ne.s32.totalorder %s94, %s110
      %p112 = scmp.eq.s32.totalorder %s23, 0
      %p113 = por %p111, %p112
      %s114 = ssub.s32 %s24, %s36
      %p115 = scmp.eq.s32.totalorder %s114, 0
      %s117 = sadd.s32 %s116, 1
      %s118 = scalar_select %p115, %s116, %s117
      %p121 = pneg %p115
      %p122 = scmp.eq.s32.totalorder %s17, 1
      %p123 = por %p121, %p122
      %p124 = scmp.ne.s32.totalorder %s116, %s119
      %p125 = scmp.eq.s32.totalorder %s17, 0
      %p126 = por %p124, %p125
      %p127 = scmp.ne.s32.totalorder %s116, %s119
      %p128 = scmp.eq.s32.totalorder %s22, 1
      %p129 = por %p127, %p128
      %p130 = scmp.ne.s32.totalorder %s119, %s120
      %p131 = scmp.eq.s32.totalorder %s22, 0
      %p132 = por %p130, %p131
      %p133 = scmp.ne.s32.totalorder %s119, %s120
      %p134 = scmp.eq.s32.totalorder %s23, 1
      %p135 = por %p133, %p134
      %p137 = scmp.ne.s32.totalorder %s120, %s136
      %p138 = scmp.eq.s32.totalorder %s23, 0
      %p139 = por %p137, %p138
      %s140 = ssub.s32 %s24, %s36
      %p141 = scmp.eq.s32.totalorder %s140, 0
      %s143 = sadd.s32 %s142, 1
      %s144 = scalar_select %p141, %s142, %s143
      %p147 = pneg %p141
      %p148 = scmp.eq.s32.totalorder %s17, 1
      %p149 = por %p147, %p148
      %p150 = scmp.ne.s32.totalorder %s142, %s145
      %p151 = scmp.eq.s32.totalorder %s17, 0
      %p152 = por %p150, %p151
      %p153 = scmp.ne.s32.totalorder %s142, %s145
      %p154 = scmp.eq.s32.totalorder %s22, 1
      %p155 = por %p153, %p154
      %p156 = scmp.ne.s32.totalorder %s145, %s146
      %p157 = scmp.eq.s32.totalorder %s22, 0
      %p158 = por %p156, %p157
      %p159 = scmp.ne.s32.totalorder %s145, %s146
      %p160 = scmp.eq.s32.totalorder %s23, 1
      %p161 = por %p159, %p160
      %p163 = scmp.ne.s32.totalorder %s146, %s162
      %p164 = scmp.eq.s32.totalorder %s23, 0
      %p165 = por %p163, %p164
      %p166 = scmp.le.s32.totalorder 1, %s17
      %p167 = scmp.lt.s32.totalorder %s17, 3
      %p168 = pnand %p166, %p167
      %p169 = pneg %p168
      // Predicated region
      $region9: #{tpu_custom_call.1} parent=5 // pred_check
        _
      $region10: #{tpu_custom_call.1} parent=5 // pred_check_branch
        %171 = sbr.rel (%p168) target = $region12
      $region11: #{tpu_custom_call.1} parent=5 // pred_region
        %s172 = ssub.s32 %s17, 1
        // Predicated region
        $region13: #{tpu_custom_call.1} parent=11 // pred_check
          %p173 = pneg %p78
        $region14: #{tpu_custom_call.1} parent=11 // pred_check_branch
          %175 = sbr.rel (%p173) target = $region16
        $region15: #{tpu_custom_call.1} parent=11 // pred_region
          _
        $region16: #{tpu_custom_call.1} parent=11 // pred_fallthru
          _
      $region12: #{tpu_custom_call.1} parent=5 // pred_fallthru
        _
      %p176 = scmp.lt.s32.totalorder %s17, 2
      // Predicated region
      $region17: #{tpu_custom_call.1} parent=5 // pred_check
        %p177 = pneg %p176
      $region18: #{tpu_custom_call.1} parent=5 // pred_check_branch
        %179 = sbr.rel (%p177) target = $region20
      $region19: #{tpu_custom_call.1} parent=5 // pred_region
        // Predicated region
        $region21: #{tpu_custom_call.1} parent=19 // pred_check
          %p180 = pneg %p51
        $region22: #{tpu_custom_call.1} parent=19 // pred_check_branch
          %182 = sbr.rel (%p180) target = $region24
        $region23: #{tpu_custom_call.1} parent=19 // pred_region
          %s183 = sadd.s32 %s24, %s25
          %s184 = smul.u32 8, %s183
          %p185 = scmp.lt.s32.totalorder %s184, 15
          %s186 = scalar_select %p185, %s184, 15
          %s187 = smul.addr %s186, 8
          %s188 = scalar_lea.vmem %s0, %s187
          %s189 = sadd.s32 %s24, %s25
          %s190 = smul.u32 8, %s189
        $region24: #{tpu_custom_call.1} parent=19 // pred_fallthru
          _
      $region20: #{tpu_custom_call.1} parent=5 // pred_fallthru
        _
      %p191 = scmp.le.s32.totalorder 1, %s17
      %p192 = scmp.lt.s32.totalorder %s17, 3
      %p193 = pnand %p191, %p192
      %p194 = pneg %p193
      // Predicated region
      $region25: #{tpu_custom_call.1} parent=5 // pred_check
        _
      $region26: #{tpu_custom_call.1} parent=5 // pred_check_branch
        %196 = sbr.rel (%p193) target = $region28
      $region27: #{tpu_custom_call.1} parent=5 // pred_region
        %s197 = ssub.s32 %s17, 1
        %s198 = sadd.s32 %s26, %s27
        %s199 = smul.u32 8, %s198
        %p200 = scmp.lt.s32.totalorder %s199, 15
        %s201 = scalar_select %p200, %s199, 15
        %s202 = smul.addr %s201, 8
        %s203 = scalar_lea.vmem %s0, %s202
        %p204 = pneg %p57
        %p205 = pneg %p54
        %p206 = pneg %p78
        %p207 = pneg %p75
        %p208 = pneg %p106
        %p209 = pneg %p103
        %s210 = sadd.s32 %s26, %s27
        %s211 = smul.u32 8, %s210
        %p212 = scmp.lt.s32.totalorder %s211, 15
        %s213 = scalar_select %p212, %s211, 15
        %s214 = smul.addr %s213, 8
        %s215 = scalar_lea.vmem %s2, %s214
        %p216 = pneg %p132
        %p217 = pneg %p129
        %s218 = sand.u32 %s119, 1
        %s219 = scalar_lea.sflag [#allocation3], %s218
        %s220 = sand.u32 %s119, 1
        %s221 = scalar_lea.vmem [#allocation2], %s220
        %p222 = pneg %p158
        %p223 = pneg %p155
        %s224 = sand.u32 %s145, 1
        %s225 = scalar_lea.sflag [#allocation5], %s224
        %s226 = sand.u32 %s145, 1
        %s227 = scalar_lea.vmem [#allocation4], %s226
        %s228 = sadd.s32 %s26, %s27
        %s229 = smul.u32 8, %s228
        %p230 = scmp.lt.s32.totalorder %s229, 15
        %s231 = scalar_select %p230, %s229, 15
        %s232 = smul.addr %s231, 8
        %s233 = scalar_lea.vmem %s0, %s232
        %s234 = sadd.s32 %s26, %s27
        %s235 = smul.u32 8, %s234
        %s236 = sadd.s32 %s26, %s27
        %s237 = smul.u32 8, %s236
        %p238 = scmp.lt.s32.totalorder %s237, 15
        %s239 = scalar_select %p238, %s237, 15
        %s240 = smul.addr %s239, 8
        %s241 = scalar_lea.vmem %s2, %s240
        %s242 = sadd.s32 %s26, %s27
        %s243 = smul.u32 8, %s242
        %v244 = vld [vmem:[%s233] sm:$0xff]
        %v245 = vld [vmem:[%s233 + $0x8] sm:$0xff]
        %v246 = vld [vmem:[%s233 + $0x10] sm:$0xff]
        %v247 = vld [vmem:[%s233 + $0x18] sm:$0xff]
        %v248 = vld [vmem:[%s233 + $0x20] sm:$0xff]
        %v249 = vld [vmem:[%s233 + $0x28] sm:$0xff]
        %v250 = vld [vmem:[%s233 + $0x30] sm:$0xff]
        %v251 = vld [vmem:[%s233 + $0x38] sm:$0xff]
        %v252 = vld [vmem:[%s1] sm:$0x7]
        %vm253 = vcmask 23552
        %v255 = vsel %vm253, %v244, 0
        %v258 = vsel %vm253, %v245, 0
        %v261 = vsel %vm253, %v246, 0
        %v264 = vsel %vm253, %v247, 0
        %v267 = vsel %vm253, %v248, 0
        %v270 = vsel %vm253, %v249, 0
        %v273 = vsel %vm253, %v250, 0
        %v276 = vsel %vm253, %v251, 0
        %vm278 = vcmask 1042432
        %v280 = vsel %vm278, %v252, 0
        %282 = vmatprep.subr.mxu0 0.0
        %283 = vmatpush1.msra.mxu0 %v280
        %284 = vmatprep.subr.mxu0 0.0
        %285 = vmatpush1.msra.mxu0 0.0
        %286 = vmatprep.subr.mxu0 0.0
        %287 = vmatpush1.msra.mxu0 0.0
        %288 = vmatprep.subr.mxu0 0.0
        %289 = vmatpush1.msra.mxu0 0.0
        %290 = vmatprep.subr.mxu0 0.0
        %291 = vmatpush1.msra.mxu0 0.0
        %292 = vmatprep.subr.mxu0 0.0
        %293 = vmatpush1.msra.mxu0 0.0
        %294 = vmatprep.subr.mxu0 0.0
        %295 = vmatpush1.msra.mxu0 0.0
        %296 = vmatprep.subr.mxu0 0.0
        %297 = vmatpush1.msra.mxu0 0.0
        %298 = vmatprep.subr.mxu0 0.0
        %299 = vmatpush1.msra.mxu0 0.0
        %300 = vmatprep.subr.mxu0 0.0
        %301 = vmatpush1.msra.mxu0 0.0
        %302 = vmatprep.subr.mxu0 0.0
        %303 = vmatpush1.msra.mxu0 0.0
        %304 = vmatprep.subr.mxu0 0.0
        %305 = vmatpush1.msra.mxu0 0.0
        %306 = vmatprep.subr.mxu0 0.0
        %307 = vmatpush1.msra.mxu0 0.0
        %308 = vmatprep.subr.mxu0 0.0
        %309 = vmatpush1.msra.mxu0 0.0
        %310 = vmatprep.subr.mxu0 0.0
        %311 = vmatpush1.msra.mxu0 0.0
        %312 = vmatprep.subr.mxu0 0.0
        %313 = vmatpush1.msra.mxu0 0.0
        %314 = vmatprep.subr.mxu0 0.0
        %315 = vmatpush1.msra.mxu0 0.0
        %316 = vmatprep.subr.mxu0 0.0
        %317 = vmatpush1.msra.mxu0 0.0
        %318 = vmatprep.subr.mxu0 0.0
        %319 = vmatpush1.msra.mxu0 0.0
        %320 = vmatprep.subr.mxu0 0.0
        %321 = vmatpush1.msra.mxu0 0.0
        %322 = vmatprep.subr.mxu0 0.0
        %323 = vmatpush1.msra.mxu0 0.0
        %324 = vmatprep.subr.mxu0 0.0
        %325 = vmatpush1.msra.mxu0 0.0
        %326 = vmatprep.subr.mxu0 0.0
        %327 = vmatpush1.msra.mxu0 0.0
        %328 = vmatprep.subr.mxu0 0.0
        %329 = vmatpush1.msra.mxu0 0.0
        %330 = vmatprep.subr.mxu0 0.0
        %331 = vmatpush1.msra.mxu0 0.0
        %332 = vmatprep.subr.mxu0 0.0
        %333 = vmatpush1.msra.mxu0 0.0
        %334 = vmatprep.subr.mxu0 0.0
        %335 = vmatpush1.msra.mxu0 0.0
        %336 = vmatprep.subr.mxu0 0.0
        %337 = vmatpush1.msra.mxu0 0.0
        %338 = vmatprep.subr.mxu0 0.0
        %339 = vmatpush1.msra.mxu0 0.0
        %340 = vmatprep.subr.mxu0 0.0
        %341 = vmatpush1.msra.mxu0 0.0
        %342 = vmatprep.subr.mxu0 0.0
        %343 = vmatpush1.msra.mxu0 0.0
        %344 = vmatprep.subr.mxu0 0.0
        %345 = vmatpush1.msra.mxu0 0.0
        %346 = vmatprep.mubr.f32.mxu0 0.0
        %347 = vmatmul.mubr.f32.gmra.mrb[0].mxu0 %v255
        %v348 = vpop.f32.mrb[0].mxu0
        %v349 = vadd.f32 0.0, %v348
        %v350 = vpop.f32.mrb[0].mxu0
        %351 = vmatprep.mubr.f32.mxu0 0.0
        %352 = vmatmul.mubr.f32.gmra.mrb[0].mxu0 %v258
        %v353 = vpop.f32.mrb[0].mxu0
        %v354 = vadd.f32 0.0, %v353
        %v355 = vpop.f32.mrb[0].mxu0
        %356 = vmatprep.mubr.f32.mxu0 0.0
        %357 = vmatmul.mubr.f32.gmra.mrb[0].mxu0 %v261
        %v358 = vpop.f32.mrb[0].mxu0
        %v359 = vadd.f32 0.0, %v358
        %v360 = vpop.f32.mrb[0].mxu0
        %361 = vmatprep.mubr.f32.mxu0 0.0
        %362 = vmatmul.mubr.f32.gmra.mrb[0].mxu0 %v264
        %v363 = vpop.f32.mrb[0].mxu0
        %v364 = vadd.f32 0.0, %v363
        %v365 = vpop.f32.mrb[0].mxu0
        %366 = vmatprep.mubr.f32.mxu0 0.0
        %367 = vmatmul.mubr.f32.gmra.mrb[0].mxu0 %v267
        %v368 = vpop.f32.mrb[0].mxu0
        %v369 = vadd.f32 0.0, %v368
        %v370 = vpop.f32.mrb[0].mxu0
        %371 = vmatprep.mubr.f32.mxu0 0.0
        %372 = vmatmul.mubr.f32.gmra.mrb[0].mxu0 %v270
        %v373 = vpop.f32.mrb[0].mxu0
        %v374 = vadd.f32 0.0, %v373
        %v375 = vpop.f32.mrb[0].mxu0
        %376 = vmatprep.mubr.f32.mxu0 0.0
        %377 = vmatmul.mubr.f32.gmra.mrb[0].mxu0 %v273
        %v378 = vpop.f32.mrb[0].mxu0
        %v379 = vadd.f32 0.0, %v378
        %v380 = vpop.f32.mrb[0].mxu0
        %381 = vmatprep.mubr.f32.mxu0 0.0
        %382 = vmatmul.mubr.f32.gmra.mrb[0].mxu0 %v276
        %v383 = vpop.f32.mrb[0].mxu0
        %v384 = vadd.f32 0.0, %v383
        %v385 = vpop.f32.mrb[0].mxu0
        %386 = vdwg.mxu0
        %vm387 = vcmask 523264
        %388 = vst.msk [vmem:[%s241] sm:$0xff] %vm387, %v349
        %389 = vst.msk [vmem:[%s241 + $0x8] sm:$0xff] %vm387, %v354
        %390 = vst.msk [vmem:[%s241 + $0x10] sm:$0xff] %vm387, %v359
        %391 = vst.msk [vmem:[%s241 + $0x18] sm:$0xff] %vm387, %v364
        %392 = vst.msk [vmem:[%s241 + $0x20] sm:$0xff] %vm387, %v369
        %393 = vst.msk [vmem:[%s241 + $0x28] sm:$0xff] %vm387, %v374
        %394 = vst.msk [vmem:[%s241 + $0x30] sm:$0xff] %vm387, %v379
        %395 = vst.msk [vmem:[%s241 + $0x38] sm:$0xff] %vm387, %v384
        %p396 = scmp.eq.s32.totalorder %s27, 0
        // Predicated region
        $region29: #{tpu_custom_call.1} parent=27 // pred_check
          %p397 = pneg %p396
        $region30: #{tpu_custom_call.1} parent=27 // pred_check_branch
          %399 = sbr.rel (%p397) target = $region32
        $region31: #{tpu_custom_call.1} parent=27 // pred_region
          %vm400 = vcmask 516096
          %401 = vst.msk [vmem:[%s221] sm:$0x1] %vm400, 0.0
          %402 = vst.msk [vmem:[%s227] sm:$0x1] %vm400, 0.0
        $region32: #{tpu_custom_call.1} parent=27 // pred_fallthru
          _
        %v403 = vld [vmem:[%s221] sm:$0x1]
        %v404 = vsel %vm387, %v349, 0.0
        %v405 = vsel %vm387, %v354, 0.0
        %v406 = vadd.f32 %v404, %v405
        %v407 = vsel %vm387, %v359, 0.0
        %v408 = vadd.f32 %v406, %v407
        %v409 = vsel %vm387, %v364, 0.0
        %v410 = vadd.f32 %v408, %v409
        %v411 = vsel %vm387, %v369, 0.0
        %v412 = vadd.f32 %v410, %v411
        %v413 = vsel %vm387, %v374, 0.0
        %v414 = vadd.f32 %v412, %v413
        %v415 = vsel %vm387, %v379, 0.0
        %v416 = vadd.f32 %v414, %v415
        %v417 = vsel %vm387, %v384, 0.0
        %v418 = vadd.f32 %v416, %v417
        %v419 = vrot.slane %v418, 4
        %v420 = vadd.f32 %v418, %v419
        %v421 = vrot.slane %v420, 2
        %v422 = vadd.f32 %v420, %v421
        %v423 = vrot.slane %v422, 1
        %v424 = vadd.f32 %v422, %v423
        %v425 = vadd.f32 %v403, %v424
        %vm426 = vcmask 516096
        %427 = vst.msk [vmem:[%s221] sm:$0x1] %vm426, %v425
        %v428 = vld [vmem:[%s227] sm:$0x1]
        %v429 = vmul.f32 %v349, %v349
        %v430 = vmul.f32 %v354, %v354
        %v431 = vmul.f32 %v359, %v359
        %v432 = vmul.f32 %v364, %v364
        %v433 = vmul.f32 %v369, %v369
        %v434 = vmul.f32 %v374, %v374
        %v435 = vmul.f32 %v379, %v379
        %v436 = vmul.f32 %v384, %v384
        %v437 = vsel %vm387, %v429, 0.0
        %v438 = vsel %vm387, %v430, 0.0
        %v439 = vadd.f32 %v437, %v438
        %v440 = vsel %vm387, %v431, 0.0
        %v441 = vadd.f32 %v439, %v440
        %v442 = vsel %vm387, %v432, 0.0
        %v443 = vadd.f32 %v441, %v442
        %v444 = vsel %vm387, %v433, 0.0
        %v445 = vadd.f32 %v443, %v444
        %v446 = vsel %vm387, %v434, 0.0
        %v447 = vadd.f32 %v445, %v446
        %v448 = vsel %vm387, %v435, 0.0
        %v449 = vadd.f32 %v447, %v448
        %v450 = vsel %vm387, %v436, 0.0
        %v451 = vadd.f32 %v449, %v450
        %v452 = vrot.slane %v451, 4
        %v453 = vadd.f32 %v451, %v452
        %v454 = vrot.slane %v453, 2
        %v455 = vadd.f32 %v453, %v454
        %v456 = vrot.slane %v455, 1
        %v457 = vadd.f32 %v455, %v456
        %v458 = vadd.f32 %v428, %v457
        %459 = vst.msk [vmem:[%s227] sm:$0x1] %vm426, %v458
        %s460 = sadd.s32 %s26, %s27
        %s461 = smul.u32 8, %s460
        %p462 = scmp.lt.s32.totalorder %s461, 15
        %s463 = scalar_select %p462, %s461, 15
        %s464 = smul.addr %s463, 8
        %s465 = scalar_lea.vmem %s2, %s464
        %s466 = sand.u32 %s119, 1
        %s467 = scalar_lea.sflag [#allocation3], %s466
        %s468 = sand.u32 %s119, 1
        %s469 = scalar_lea.vmem [#allocation2], %s468
        %s470 = sand.u32 %s145, 1
        %s471 = scalar_lea.sflag [#allocation5], %s470
        %s472 = sand.u32 %s145, 1
        %s473 = scalar_lea.vmem [#allocation4], %s472
        // Predicated region
        $region33: #{tpu_custom_call.1} parent=27 // pred_check
          %p474 = pneg %p103
        $region34: #{tpu_custom_call.1} parent=27 // pred_check_branch
          %476 = sbr.rel (%p474) target = $region36
        $region35: #{tpu_custom_call.1} parent=27 // pred_region
          %s477 = sadd.s32 %s26, %s27
          %s478 = smul.u32 8, %s477
        $region36: #{tpu_custom_call.1} parent=27 // pred_fallthru
          _
        // Predicated region
        $region37: #{tpu_custom_call.1} parent=27 // pred_check
          %p479 = pneg %p129
        $region38: #{tpu_custom_call.1} parent=27 // pred_check_branch
          %481 = sbr.rel (%p479) target = $region40
        $region39: #{tpu_custom_call.1} parent=27 // pred_region
          %s483 = ssub.s32 16, 16
          %484 = vsyncadd %s467, %s483
          %s485 = smul.addr %s26, 16
          %s486 = scalar_lea.hbm %s3, %s485
          %s488 = sshll.u32 %s469, 4
          %s489 = int_to_ptr.vmem [resolvable:$true] %s488
          %491 = dma.vmem_to_hbm [thread:$0]  %s489, 16, %s486, %s467
        $region40: #{tpu_custom_call.1} parent=27 // pred_fallthru
          _
        // Predicated region
        $region41: #{tpu_custom_call.1} parent=27 // pred_check
          %p492 = pneg %p155
        $region42: #{tpu_custom_call.1} parent=27 // pred_check_branch
          %494 = sbr.rel (%p492) target = $region44
        $region43: #{tpu_custom_call.1} parent=27 // pred_region
          %s496 = ssub.s32 16, 16
          %497 = vsyncadd %s471, %s496
          %s498 = smul.addr %s26, 16
          %s499 = scalar_lea.hbm %s4, %s498
          %s501 = sshll.u32 %s473, 4
          %s502 = int_to_ptr.vmem [resolvable:$true] %s501
          %504 = dma.vmem_to_hbm [thread:$0]  %s502, 16, %s499, %s471
        $region44: #{tpu_custom_call.1} parent=27 // pred_fallthru
          _
      $region28: #{tpu_custom_call.1} parent=5 // pred_fallthru
        _
      %p505 = scmp.le.s32.totalorder 2, %s17
      // Predicated region
      $region45: #{tpu_custom_call.1} parent=5 // pred_check
        %p506 = pneg %p505
      $region46: #{tpu_custom_call.1} parent=5 // pred_check_branch
        %508 = sbr.rel (%p506) target = $region48
      $region47: #{tpu_custom_call.1} parent=5 // pred_region
        %s509 = ssub.s32 %s17, 2
        // Predicated region
        $region49: #{tpu_custom_call.1} parent=47 // pred_check
          %p510 = pneg %p109
        $region50: #{tpu_custom_call.1} parent=47 // pred_check_branch
          %512 = sbr.rel (%p510) target = $region52
        $region51: #{tpu_custom_call.1} parent=47 // pred_region
          %s513 = sadd.s32 %s28, %s29
          %s514 = smul.u32 8, %s513
          %p515 = scmp.lt.s32.totalorder %s514, 15
          %s516 = scalar_select %p515, %s514, 15
          %s517 = smul.addr %s516, 8
          %s518 = scalar_lea.vmem %s2, %s517
        $region52: #{tpu_custom_call.1} parent=47 // pred_fallthru
          _
        // Predicated region
        $region53: #{tpu_custom_call.1} parent=47 // pred_check
          %p519 = pneg %p135
        $region54: #{tpu_custom_call.1} parent=47 // pred_check_branch
          %521 = sbr.rel (%p519) target = $region56
        $region55: #{tpu_custom_call.1} parent=47 // pred_region
          %s522 = sand.u32 %s120, 1
          %s523 = scalar_lea.sflag [#allocation3], %s522
          %s524 = sand.u32 %s120, 1
          %s525 = scalar_lea.vmem [#allocation2], %s524
          %526 = dma.done %s523, 16
        $region56: #{tpu_custom_call.1} parent=47 // pred_fallthru
          _
        // Predicated region
        $region57: #{tpu_custom_call.1} parent=47 // pred_check
          %p527 = pneg %p161
        $region58: #{tpu_custom_call.1} parent=47 // pred_check_branch
          %529 = sbr.rel (%p527) target = $region60
        $region59: #{tpu_custom_call.1} parent=47 // pred_region
          %s530 = sand.u32 %s146, 1
          %s531 = scalar_lea.sflag [#allocation5], %s530
          %s532 = sand.u32 %s146, 1
          %s533 = scalar_lea.vmem [#allocation4], %s532
          %534 = dma.done %s531, 16
        $region60: #{tpu_custom_call.1} parent=47 // pred_fallthru
          _
      $region48: #{tpu_custom_call.1} parent=5 // pred_fallthru
        _
    $region6: #{tpu_custom_call.1} parent=1 // loop_footer
      %s21 = sadd.s32 1, %s17
    $region7: #{tpu_custom_call.1} parent=1 // loop_footer_branch
      %16 = sbr.rel target = $region3
    $region8: #{tpu_custom_call.1} parent=1 // loop_exit
      _
    %535 = vsyncpa [#allocation3], 1
    %s536 = scalar_lea.sflag [#allocation3], 1
    %537 = vsyncpa %s536, 1
    %538 = vsyncpa [#allocation5], 1
    %s539 = scalar_lea.sflag [#allocation5], 1
    %540 = vsyncpa %s539, 1

</llo_original>
